<compile_context>
chip_gen: v5e
topology: v5e:2x2
jax: 0.10.0
libtpu: 0.0.40
codegen_flags: <defaults>
</compile_context>

<pallas_src>
import jax
import jax.numpy as jnp
from jax.experimental import pallas as pl
from jax.experimental.pallas import tpu as pltpu


def attention_head_kernel(feat_ref, mask_ref, w_ref, bw_ref, v_ref, bv_ref,
                          out_ref):
    TB, Fp = out_ref.shape
    rows = feat_ref.shape[0]          # TB * Sp
    Sp = rows // TB

    feats = feat_ref[...]                                   # (rows, Fp) bf16

    # att = tanh(features @ W^T + b_W): one MXU matmul over all TB*Sp rows,
    # bf16 operands, f32 accumulation; elementwise / transcendental math stays
    # f32 (v5e has no bf16 VPU/EUP).
    att = jnp.tanh(
        jnp.dot(feats, w_ref[...], preferred_element_type=jnp.float32)
        + bw_ref[...])                                      # (rows, H) f32

    # score = V(att) + b_V as a VPU multiply + lane-axis reduce (an N=1 MXU
    # matmul would waste 127/128 result lanes).
    score = (jnp.sum(att * v_ref[...], axis=-1, keepdims=True)
             + bv_ref[0])                                   # (rows, 1) f32

    # score[attention_mask == 0] = -10000.0
    mk = mask_ref[...].astype(jnp.float32)                  # (rows, 1) 0/1
    score = jnp.where(mk == 0.0, jnp.float32(-10000.0), score)

    # Softmax over the sequence axis, vectorized over the TB batch rows.
    # Softmax is shift-invariant, so one block-global max is subtracted
    # instead of a per-row max: scores are tanh-bounded (|score| <= ||V||_1 +
    # |b_V|), so exp() cannot overflow, and masked rows (-10000) flush to 0
    # exactly as torch's f32 softmax does.
    gmax = jnp.max(score)                                   # scalar
    e = jnp.exp(score - gmax)                               # (rows, 1) unnormalized

    # weights * mask * features (normalization folded into the final scale).
    # NOTE(perf): kept in f32 for v5e (no bf16 VPU); on v6e/v7x a bf16
    # multiply with f32 accumulation would halve vreg traffic here.
    w_col = e * mk                                          # (rows, 1)
    wx = w_col * feats.astype(jnp.float32)                  # (rows, Fp) f32

    # Per-batch-row segment sums (context vector and softmax denominator) as
    # MXU matmuls against a constant 0/1 selection matrix: seg[b, r] = 1 iff
    # row r belongs to batch row b.  Built from iota -> no relayout, and the
    # (TB, Fp) result is born sublane/lane dense for a single wide store.
    row_id = jax.lax.broadcasted_iota(jnp.int32, (TB, rows), 1)
    seg_lo = jax.lax.broadcasted_iota(jnp.int32, (TB, rows), 0) * Sp
    seg = jnp.logical_and(row_id >= seg_lo, row_id < seg_lo + Sp)
    seg_f = seg.astype(jnp.float32)                         # (TB, rows)

    ctx = jnp.dot(seg_f, wx, preferred_element_type=jnp.float32)   # (TB, Fp)
    denom = jnp.dot(seg_f, e, preferred_element_type=jnp.float32)  # (TB, 1)

    # Fold the softmax normalization into one approximate EUP reciprocal.  The
    # tiny clamp keeps an all-masked batch row at exactly 0 (matching torch,
    # where softmax-uniform weights are multiplied by a zero mask).
    inv = pl.reciprocal(jnp.maximum(denom, jnp.float32(1e-30)), approx=True)
    out_ref[...] = ctx * inv                                # one dense store


def _default_block_batch(B, Sp, Fp):
    """Batch rows handled per grid step.

    Capped so that (a) the double-buffered bf16 features block stays ~<=2 MiB
    (fits v7x's 64 MiB VMEM with room to spare; raise block_batch on v5e/v6e
    for bigger blocks / fewer grid steps) and (b) the 128x-lane-padded
    (rows, 1) f32 score/weight columns and the (TB, rows) selection matrix
    stay small.
    """
    rows_cap = max(Sp, min((2 * 1024 * 1024) // (Fp * 2), 1024))
    cap = max(1, min(rows_cap // Sp, B))
    # Prefer a sublane-dense (multiple of 8) output block; TB == B is also
    # always legal (block dim == full array dim).
    for tb in range(cap, 0, -1):
        if B % tb == 0 and tb % 8 == 0:
            return tb
    if B <= cap:
        return B
    # No sublane-aligned divisor fits the budget: fall back to the full batch
    # (always a legal block shape) and let the VMEM limit grow accordingly.
    return B


def _vmem_estimate_bytes(TB, Sp, Fp, H):
    lane = 128
    rows = TB * Sp
    feat_blk = rows * Fp * 2            # bf16 features block (double-buffered)
    mask_blk = rows * lane * 2          # (rows, 1) bf16 lane-pads 1 -> 128
    out_blk = TB * Fp * 4
    consts = Fp * H * 2 + 2 * H * 4
    inter = rows * (H + Fp) * 4         # f32 att + weighted features
    inter += 4 * rows * lane * 4        # lane-padded (rows, 1) f32 columns
    inter += TB * rows * 4              # segment-sum selection matrix
    return 2 * (feat_blk + mask_blk + out_blk) + consts + inter


def attention_head(features, attention_mask, W, bW, V, bV, *,
                   block_batch=None, vmem_limit_bytes=None):
    """features: (B,S,F), attention_mask: (B,S) 0/1,
    W: (F,H) (pre-transposed vs. torch weight), bW: (H,), V: (H,1), bV: (1,)."""
    B, S, F = features.shape
    H = W.shape[1]
    Fp = ((F + 127) // 128) * 128       # lane-dense feature / output columns
    Sp = ((S + 7) // 8) * 8             # sublane-tile-aligned sequence axis

    feats = features.astype(jnp.bfloat16)
    Wp = W.astype(jnp.bfloat16)
    mask = attention_mask.astype(jnp.bfloat16)
    if Fp != F:
        feats = jnp.pad(feats, ((0, 0), (0, 0), (0, Fp - F)))
        Wp = jnp.pad(Wp, ((0, Fp - F), (0, 0)))  # zero rows: x_pad @ W_pad == x @ W
    if Sp != S:
        # Padded sequence rows carry mask == 0, so they contribute nothing to
        # the softmax-weighted sum (module semantics preserved).
        feats = jnp.pad(feats, ((0, 0), (0, Sp - S), (0, 0)))
        mask = jnp.pad(mask, ((0, 0), (0, Sp - S)))

    # Fold (B, Sp, Fp) -> (B*Sp, Fp) in HBM (free for the kernel) so the block
    # arrives 2-D and needs no in-kernel relayout before the MXU matmul.
    feats2d = feats.reshape(B * Sp, Fp)
    mask2d = mask.reshape(B * Sp, 1)
    # TODO(synk): if the mask is always a length prefix, pass per-row lengths
    # via PrefetchScalarGridSpec(num_scalar_prefetch=1) and build the mask
    # in-kernel with broadcasted_iota instead of streaming it from HBM.

    bW2 = bW.reshape(1, H).astype(jnp.float32)
    v_row = V.reshape(1, H).astype(jnp.float32)
    bV1 = bV.reshape(1).astype(jnp.float32)       # SMEM scalar

    TB = block_batch if block_batch is not None else _default_block_batch(B, Sp, Fp)
    if B % TB != 0:
        raise ValueError("block_batch must divide the batch size")
    if TB % 8 != 0 and TB != B:
        raise ValueError("block_batch must be a multiple of 8 or the full batch")
    grid = (B // TB,)

    if vmem_limit_bytes is None:
        est = _vmem_estimate_bytes(TB, Sp, Fp, H)
        vmem_limit_bytes = int(min(max(est + (8 << 20), 32 << 20), 64 << 20))

    rows_total = B * Sp
    cost = pl.CostEstimate(
        flops=(2 * rows_total * Fp * H          # att matmul
               + 2 * rows_total * H             # score reduce
               + 2 * rows_total * Fp            # weighted features
               + 2 * rows_total * TB * (Fp + 1)),  # segment-sum matmuls
        transcendentals=rows_total * (H + 1) + B,  # tanh, exp, reciprocal
        bytes_accessed=(feats2d.size * 2 + mask2d.size * 2 + Wp.size * 2
                        + bW2.size * 4 + v_row.size * 4 + 4 + B * Fp * 4),
    )

    out = pl.pallas_call(
        attention_head_kernel,
        out_shape=jax.ShapeDtypeStruct((B, Fp), jnp.float32),
        grid_spec=pltpu.PrefetchScalarGridSpec(
            num_scalar_prefetch=0,
            grid=grid,
            in_specs=[
                pl.BlockSpec((TB * Sp, Fp), lambda b: (b, 0)),   # features (bf16, 2-D)
                pl.BlockSpec((TB * Sp, 1), lambda b: (b, 0)),    # mask (bf16)
                pl.BlockSpec((Fp, H), lambda b: (0, 0)),         # W (bf16)
                pl.BlockSpec((1, H), lambda b: (0, 0)),          # b_W
                pl.BlockSpec((1, H), lambda b: (0, 0)),          # V row
                pl.BlockSpec(memory_space=pltpu.MemorySpace.SMEM),  # b_V scalar
            ],
            out_specs=pl.BlockSpec((TB, Fp), lambda b: (b, 0)),
        ),
        compiler_params=pltpu.CompilerParams(
            dimension_semantics=("parallel",),
            vmem_limit_bytes=vmem_limit_bytes),
        cost_estimate=cost,
    )(feats2d, mask2d, Wp, bW2, v_row, bV1)

    return out[:, :F]


if __name__ == "__main__":
    B, S, F, H = 2, 8, 32, 32   # batch, seq, in_features, hidden_dim

    key = jax.random.PRNGKey(0)
    k1, k2, k3, k4, k5 = jax.random.split(key, 5)

    features = jax.random.normal(k1, (B, S, F), jnp.float32)
    lengths = jnp.array([S, 5])
    attention_mask = (jnp.arange(S)[None, :] < lengths[:, None]).astype(jnp.int32)

    # "Linear" parameters (W stored as (in_features, hidden) so the kernel
    # computes x @ W, matching torch's x @ weight.T).
    W = 0.1 * jax.random.normal(k2, (F, H), jnp.float32)
    bW = 0.1 * jax.random.normal(k3, (H,), jnp.float32)
    V = 0.1 * jax.random.normal(k4, (H, 1), jnp.float32)
    bV = 0.1 * jax.random.normal(k5, (1,), jnp.float32)

    out = jax.block_until_ready(
        attention_head(features, attention_mask, W, bW, V, bV))
    assert out.shape == (B, F)

    mask3 = attention_mask[..., None].astype(jnp.float32)

    def reference(feat_in, w_in):
        att = jnp.tanh(jnp.dot(feat_in, w_in,
                               precision=jax.lax.Precision.HIGHEST) + bW)
        score = jnp.sum(att * V.reshape(1, 1, H), axis=-1, keepdims=True) + bV
        score = jnp.where(attention_mask[..., None] == 0, -10000.0, score)
        aw = jax.nn.softmax(score, axis=1)
        return jnp.sum(aw * mask3 * feat_in, axis=1)

    # Reference 1: same math with the kernel's bf16-operand / f32-accumulate
    # policy (tight tolerance; covers EUP tanh/exp/approx-reciprocal deltas).
    ref_bf16 = reference(features.astype(jnp.bfloat16).astype(jnp.float32),
                         W.astype(jnp.bfloat16).astype(jnp.float32))
    # Reference 2: exact f32 module semantics (loose tolerance covers the bf16
    # MXU inputs).
    ref_f32 = reference(features, W)

    assert jnp.allclose(out, ref_bf16, atol=5e-3, rtol=5e-3), (out, ref_bf16)
    assert jnp.allclose(out, ref_f32, atol=5e-2, rtol=5e-2), (out, ref_f32)
    print("KERNEL_OK")
</pallas_src>

<mosaic_0001>
module attributes {stable_mosaic.version = 11 : i64} {
  func.func @attention_head_kernel(%arg0: i32, %arg1: memref<16x128xbf16, #tpu.memory_space<vmem>>, %arg2: memref<16x1xbf16, #tpu.memory_space<vmem>>, %arg3: memref<128x32xbf16, #tpu.memory_space<vmem>>, %arg4: memref<1x32xf32, #tpu.memory_space<vmem>>, %arg5: memref<1x32xf32, #tpu.memory_space<vmem>>, %arg6: memref<1xf32, #tpu.memory_space<smem>>, %arg7: memref<2x128xf32, #tpu.memory_space<vmem>>) attributes {dimension_semantics = [#tpu.dimension_semantics<parallel>], iteration_bounds = array<i64: 1>, scalar_prefetch = 0 : i64, scratch_operands = 0 : i64, tpu.core_type = #tpu.core_type<tc>, window_params = [{transform_indices = @transform_0, window_bounds = array<i64: 16, 128>}, {transform_indices = @transform_1, window_bounds = array<i64: 16, 1>}, {pipeline_mode = #tpu.pipeline_mode<synchronous>, transform_indices = @transform_2, window_bounds = array<i64: 128, 32>}, {pipeline_mode = #tpu.pipeline_mode<synchronous>, transform_indices = @transform_3, window_bounds = array<i64: 1, 32>}, {pipeline_mode = #tpu.pipeline_mode<synchronous>, transform_indices = @transform_4, window_bounds = array<i64: 1, 32>}, {transform_indices = @transform_5, window_bounds = array<i64: 1>}, {transform_indices = @transform_6, window_bounds = array<i64: 2, 128>}]} {
    %c0 = arith.constant 0 : index
    %c0_0 = arith.constant 0 : index
    %0 = vector.load %arg1[%c0, %c0_0] : memref<16x128xbf16, #tpu.memory_space<vmem>>, vector<16x128xbf16>
    %c0_1 = arith.constant 0 : index
    %c0_2 = arith.constant 0 : index
    %1 = vector.load %arg3[%c0_1, %c0_2] : memref<128x32xbf16, #tpu.memory_space<vmem>>, vector<128x32xbf16>
    %cst = arith.constant dense<0.000000e+00> : vector<16x32xf32>
    %2 = tpu.matmul %0, %1, %cst {dimension_numbers = #tpu.dot_dimension_numbers<[1], [0], [0], [1], [0, 0, 1, 1], [], []>} : vector<16x128xbf16>, vector<128x32xbf16>, vector<16x32xf32> -> vector<16x32xf32>
    %c0_3 = arith.constant 0 : index
    %c0_4 = arith.constant 0 : index
    %3 = vector.load %arg4[%c0_3, %c0_4] : memref<1x32xf32, #tpu.memory_space<vmem>>, vector<1x32xf32>
    %4 = vector.broadcast %3 : vector<1x32xf32> to vector<16x32xf32>
    %5 = arith.addf %2, %4 : vector<16x32xf32>
    %6 = math.tanh %5 : vector<16x32xf32>
    %c0_5 = arith.constant 0 : index
    %c0_6 = arith.constant 0 : index
    %7 = vector.load %arg5[%c0_5, %c0_6] : memref<1x32xf32, #tpu.memory_space<vmem>>, vector<1x32xf32>
    %8 = vector.broadcast %7 : vector<1x32xf32> to vector<16x32xf32>
    %9 = arith.mulf %6, %8 : vector<16x32xf32>
    %cst_7 = arith.constant dense<0.000000e+00> : vector<16xf32>
    %10 = vector.multi_reduction <add>, %9, %cst_7 [1] : vector<16x32xf32> to vector<16xf32>
    %11 = vector.shape_cast %10 : vector<16xf32> to vector<16x1xf32>
    %c0_8 = arith.constant 0 : index
    %12 = memref.load %arg6[%c0_8] : memref<1xf32, #tpu.memory_space<smem>>
    %13 = vector.broadcast %12 : f32 to vector<16x1xf32>
    %14 = arith.addf %11, %13 : vector<16x1xf32>
    %c0_9 = arith.constant 0 : index
    %c0_10 = arith.constant 0 : index
    %15 = vector.load %arg2[%c0_9, %c0_10] : memref<16x1xbf16, #tpu.memory_space<vmem>>, vector<16x1xbf16>
    %16 = arith.extf %15 : vector<16x1xbf16> to vector<16x1xf32>
    %cst_11 = arith.constant 0.000000e+00 : f32
    %17 = vector.broadcast %cst_11 : f32 to vector<16x1xf32>
    %18 = arith.cmpf oeq, %16, %17 : vector<16x1xf32>
    %cst_12 = arith.constant -1.000000e+04 : f32
    %19 = vector.broadcast %cst_12 : f32 to vector<16x1xf32>
    %20 = arith.select %18, %19, %14 : vector<16x1xi1>, vector<16x1xf32>
    %21 = vector.shape_cast %20 : vector<16x1xf32> to vector<1x16x1xf32>
    %cst_13 = arith.constant dense<0xFF800000> : vector<1xf32>
    %22 = vector.multi_reduction <maximumf>, %21, %cst_13 [1, 2] : vector<1x16x1xf32> to vector<1xf32>
    %23 = vector.shape_cast %22 : vector<1xf32> to vector<1x1x1xf32>
    %24 = vector.extract %23[0, 0, 0] : f32 from vector<1x1x1xf32>
    %25 = vector.broadcast %24 : f32 to vector<16x1xf32>
    %26 = arith.subf %20, %25 : vector<16x1xf32>
    %27 = math.exp %26 : vector<16x1xf32>
    %28 = arith.mulf %27, %16 : vector<16x1xf32>
    %29 = arith.extf %0 : vector<16x128xbf16> to vector<16x128xf32>
    %30 = vector.broadcast %28 : vector<16x1xf32> to vector<16x128xf32>
    %31 = arith.mulf %30, %29 : vector<16x128xf32>
    %32 = tpu.iota {dimensions = array<i32: 1>} : vector<2x16xi32>
    %33 = tpu.iota {dimensions = array<i32: 0>} : vector<2x16xi32>
    %c8_i32 = arith.constant 8 : i32
    %34 = vector.broadcast %c8_i32 : i32 to vector<2x16xi32>
    %35 = arith.muli %33, %34 : vector<2x16xi32>
    %36 = arith.cmpi sge, %32, %35 : vector<2x16xi32>
    %c8_i32_14 = arith.constant 8 : i32
    %37 = vector.broadcast %c8_i32_14 : i32 to vector<2x16xi32>
    %38 = arith.addi %35, %37 : vector<2x16xi32>
    %39 = arith.cmpi slt, %32, %38 : vector<2x16xi32>
    %40 = arith.andi %36, %39 : vector<2x16xi1>
    %41 = arith.extui %40 : vector<2x16xi1> to vector<2x16xi32>
    %42 = arith.sitofp %41 : vector<2x16xi32> to vector<2x16xf32>
    %cst_15 = arith.constant dense<0.000000e+00> : vector<2x128xf32>
    %43 = tpu.matmul %42, %31, %cst_15 {dimension_numbers = #tpu.dot_dimension_numbers<[1], [0], [0], [1], [0, 0, 1, 1], [], []>} : vector<2x16xf32>, vector<16x128xf32>, vector<2x128xf32> -> vector<2x128xf32>
    %cst_16 = arith.constant dense<0.000000e+00> : vector<2x1xf32>
    %44 = tpu.matmul %42, %27, %cst_16 {dimension_numbers = #tpu.dot_dimension_numbers<[1], [0], [0], [1], [0, 0, 1, 1], [], []>} : vector<2x16xf32>, vector<16x1xf32>, vector<2x1xf32> -> vector<2x1xf32>
    %cst_17 = arith.constant 1.000000e-30 : f32
    %45 = vector.broadcast %cst_17 : f32 to vector<2x1xf32>
    %46 = arith.maximumf %44, %45 : vector<2x1xf32>
    %47 = tpu.reciprocal %46 {approx = true} : vector<2x1xf32> -> vector<2x1xf32>
    %48 = vector.broadcast %47 : vector<2x1xf32> to vector<2x128xf32>
    %49 = arith.mulf %43, %48 : vector<2x128xf32>
    %c0_18 = arith.constant 0 : index
    %c0_19 = arith.constant 0 : index
    %50 = vector.load %arg7[%c0_18, %c0_19] : memref<2x128xf32, #tpu.memory_space<vmem>>, vector<2x128xf32>
    tpu.vector_store %arg7[%c0_18, %c0_19], %49 {strides = array<i32>} : memref<2x128xf32, #tpu.memory_space<vmem>>, vector<2x128xf32>,
    return
  }
  func.func @transform_0(%arg0: i32) -> (i32, i32) {
    %c0_i32 = arith.constant 0 : i32
    %c0_i32_0 = arith.constant 0 : i32
    return %arg0, %c0_i32 : i32, i32
  }
  func.func @transform_1(%arg0: i32) -> (i32, i32) {
    %c0_i32 = arith.constant 0 : i32
    %c0_i32_0 = arith.constant 0 : i32
    return %arg0, %c0_i32 : i32, i32
  }
  func.func @transform_2(%arg0: i32) -> (i32, i32) {
    %c0_i32 = arith.constant 0 : i32
    %c0_i32_0 = arith.constant 0 : i32
    %c0_i32_1 = arith.constant 0 : i32
    return %c0_i32, %c0_i32_0 : i32, i32
  }
  func.func @transform_3(%arg0: i32) -> (i32, i32) {
    %c0_i32 = arith.constant 0 : i32
    %c0_i32_0 = arith.constant 0 : i32
    %c0_i32_1 = arith.constant 0 : i32
    return %c0_i32, %c0_i32_0 : i32, i32
  }
  func.func @transform_4(%arg0: i32) -> (i32, i32) {
    %c0_i32 = arith.constant 0 : i32
    %c0_i32_0 = arith.constant 0 : i32
    %c0_i32_1 = arith.constant 0 : i32
    return %c0_i32, %c0_i32_0 : i32, i32
  }
  func.func @transform_5(%arg0: i32) -> i32 {
    %c0_i32 = arith.constant 0 : i32
    %c0_i32_0 = arith.constant 0 : i32
    return %c0_i32 : i32
  }
  func.func @transform_6(%arg0: i32) -> (i32, i32) {
    %c0_i32 = arith.constant 0 : i32
    %c0_i32_0 = arith.constant 0 : i32
    return %arg0, %c0_i32 : i32, i32
  }
}

</mosaic_0001>

<llo_original>
// kernel: tpu_custom_call.1
$region0: #{tpu_custom_call.1}
  #allocation0 [shape = 'u32[]', space=smem, size = 0x4, offset = 0x4, fixed_abs, tag = 'smem constant byte address 0x4 - core index']
  #allocation1 [shape = 'u32[72,128]{1,0:T(1,128)}', space=vmem, size = 0x9000, scoped, tag = 'internal scratch']
  #allocation2 [shape = 'f32[1]{0:T(128)S(6)}', space=smem, size = 0x200, scoped, tag = 'scoped memory for tpu_custom_call.1']
  %s0 = inlined_call_operand.vmem [shape: bf16[16,128], index: 0, kind: input, shape index: {}]
  %s1 = inlined_call_operand.vmem [shape: bf16[16,1], index: 1, kind: input, shape index: {}]
  %s2 = inlined_call_operand.vmem [shape: bf16[128,32], index: 2, kind: input, shape index: {}]
  %s3 = inlined_call_operand.vmem [shape: f32[1,32], index: 3, kind: input, shape index: {}]
  %s4 = inlined_call_operand.vmem [shape: f32[1,32], index: 4, kind: input, shape index: {}]
  %s5 = inlined_call_operand.<no memory space> [shape: f32[1], index: 5, kind: input, shape index: {}]
  %s6 = inlined_call_operand.hbm [shape: f32[2,128], index: 6, kind: output, shape index: {}]
  %s7 = sld [smem:[#allocation0]]
  $region34: #{tpu_custom_call.1} parent=0
    _
  %s9 = ssub.s32 1, %s7
  %s10 = scalar_select 0, %s9, %s7
  %11 = sst [smem:[#allocation2]] %s5
  $region1: #{tpu_custom_call.1} parent=0
    #allocation3 [shape = 'u8[1024]{0}', space=vmem, size = 0x400, scoped, tag = 'output window, operand 0, single buffered']
    #allocation4 [shape = 's32[1]{0}', space=sflag, size = 0x4, scoped, tag = 'scoped memory for tpu_custom_call.1']
    %12 = vsyncpa [#allocation4], 0
    // Predicated region
    $region2: #{tpu_custom_call.1} parent=1 // pred_check
      _
    $region3: #{tpu_custom_call.1} parent=1 // pred_check_branch
      %14 = sbr.rel (0) target = $region5
    $region4: #{tpu_custom_call.1} parent=1 // pred_region
      _
    $region5: #{tpu_custom_call.1} parent=1 // pred_fallthru
      _
    // Predicated region
    $region6: #{tpu_custom_call.1} parent=1 // pred_check
      _
    $region7: #{tpu_custom_call.1} parent=1 // pred_check_branch
      %16 = sbr.rel (0) target = $region9
    $region8: #{tpu_custom_call.1} parent=1 // pred_region
      _
    $region9: #{tpu_custom_call.1} parent=1 // pred_fallthru
      _
    // Predicated region
    $region10: #{tpu_custom_call.1} parent=1 // pred_check
      _
    $region11: #{tpu_custom_call.1} parent=1 // pred_check_branch
      %18 = sbr.rel (0) target = $region13
    $region12: #{tpu_custom_call.1} parent=1 // pred_region
      _
    $region13: #{tpu_custom_call.1} parent=1 // pred_fallthru
      _
    // Predicated region
    $region14: #{tpu_custom_call.1} parent=1 // pred_check
      _
    $region15: #{tpu_custom_call.1} parent=1 // pred_check_branch
      %20 = sbr.rel (0) target = $region17
    $region16: #{tpu_custom_call.1} parent=1 // pred_region
      _
    $region17: #{tpu_custom_call.1} parent=1 // pred_fallthru
      _
    // Predicated region
    $region18: #{tpu_custom_call.1} parent=1 // pred_check
      _
    $region19: #{tpu_custom_call.1} parent=1 // pred_check_branch
      %22 = sbr.rel (0) target = $region21
    $region20: #{tpu_custom_call.1} parent=1 // pred_region
      _
    $region21: #{tpu_custom_call.1} parent=1 // pred_fallthru
      _
    // Predicated region
    $region22: #{tpu_custom_call.1} parent=1 // pred_check
      _
    $region23: #{tpu_custom_call.1} parent=1 // pred_check_branch
      %24 = sbr.rel (0) target = $region25
    $region24: #{tpu_custom_call.1} parent=1 // pred_region
      _
    $region25: #{tpu_custom_call.1} parent=1 // pred_fallthru
      _
    %v25 = vld [vmem:[%s0] sm:$0xf]
    %v26 = vld [vmem:[%s0 + $0x4] sm:$0xf]
    %v27 = vld [vmem:[%s2] sm:$0xf]
    %v28 = vld [vmem:[%s2 + $0x4] sm:$0xf]
    %v29 = vld [vmem:[%s2 + $0x8] sm:$0xf]
    %v30 = vld [vmem:[%s2 + $0xc] sm:$0xf]
    %v31 = vld [vmem:[%s2 + $0x10] sm:$0xf]
    %v32 = vld [vmem:[%s2 + $0x14] sm:$0xf]
    %v33 = vld [vmem:[%s2 + $0x18] sm:$0xf]
    %v34 = vld [vmem:[%s2 + $0x1c] sm:$0xf]
    %v35 = vld [vmem:[%s2 + $0x20] sm:$0xf]
    %v36 = vld [vmem:[%s2 + $0x24] sm:$0xf]
    %v37 = vld [vmem:[%s2 + $0x28] sm:$0xf]
    %v38 = vld [vmem:[%s2 + $0x2c] sm:$0xf]
    %v39 = vld [vmem:[%s2 + $0x30] sm:$0xf]
    %v40 = vld [vmem:[%s2 + $0x34] sm:$0xf]
    %v41 = vld [vmem:[%s2 + $0x38] sm:$0xf]
    %v42 = vld [vmem:[%s2 + $0x3c] sm:$0xf]
    %v43 = vld [vmem:[%s3] sm:$0x1]
    %v45 = vperm.slane %v43, 0
    %v49 = vunpack.c.l.b16 %v25
    %v50 = vunpack.c.l.b16 %v26
    %v51 = vpack.c.b16 %v50, %v49
    %v69 = vunpack.c.l.b16 %v27
    %v70 = vunpack.c.l.b16 %v28
    %v71 = vunpack.c.l.b16 %v29
    %v72 = vunpack.c.l.b16 %v30
    %v73 = vunpack.c.l.b16 %v31
    %v74 = vunpack.c.l.b16 %v32
    %v75 = vunpack.c.l.b16 %v33
    %v76 = vunpack.c.l.b16 %v34
    %v77 = vunpack.c.l.b16 %v35
    %v78 = vunpack.c.l.b16 %v36
    %v79 = vunpack.c.l.b16 %v37
    %v80 = vunpack.c.l.b16 %v38
    %v81 = vunpack.c.l.b16 %v39
    %v82 = vunpack.c.l.b16 %v40
    %v83 = vunpack.c.l.b16 %v41
    %v84 = vunpack.c.l.b16 %v42
    %v85 = vpack.c.b16 %v70, %v69
    %v86 = vpack.c.b16 %v72, %v71
    %v87 = vpack.c.b16 %v74, %v73
    %v88 = vpack.c.b16 %v76, %v75
    %v89 = vpack.c.b16 %v78, %v77
    %v90 = vpack.c.b16 %v80, %v79
    %v91 = vpack.c.b16 %v82, %v81
    %v92 = vpack.c.b16 %v84, %v83
    %101 = vmatpush.bf16.msra.mxu0 %v92
    %102 = vmatpush.bf16.msra.mxu0 %v91
    %103 = vmatpush.bf16.msra.mxu0 %v90
    %104 = vmatpush.bf16.msra.mxu0 %v89
    %105 = vmatpush.bf16.msra.mxu0 %v88
    %106 = vmatpush.bf16.msra.mxu0 %v87
    %107 = vmatpush.bf16.msra.mxu0 %v86
    %108 = vmatpush.bf16.msra.mxu0 %v85
    %109 = vmatmul.bf16.gmra.mxu0 %v51
    %v110 = vpop.f32.mrf.mxu0
    %v111 = vadd.f32 %v45, %v110
    %v112 = vpop.f32.mrf.mxu0
    %v113 = vadd.f32 %v45, %v112
    %114 = vdwg.mxu0
    %v115 = vtanh.pop %v111
    %v116 = vtanh.pop %v113
    %v117 = vld [vmem:[%s4] sm:$0x1]
    %v119 = vperm.slane %v117, 0
    %v121 = vmul.f32 %v115, %v119
    %v122 = vmul.f32 %v116, %v119
    %vm123 = vcmask 261120
    %v124 = vsel %vm123, %v121, 0.0
    %125 = vadd.xlane.f32.xlu0 %v124
    %v126 = vpop.xlane.xlu0 %125
    %v127 = vsel %vm123, %v122, 0.0
    %128 = vadd.xlane.f32.xlu0 %v127
    %v129 = vpop.xlane.xlu0 %128
    %s130 = sld [smem:[#allocation2]]
    %v131 = vstv %s130
    %v132 = vadd.f32 %v126, %v131
    %v133 = vadd.f32 %v129, %v131
    %v134 = vld [vmem:[%s1] sm:$0xf]
    %v135 = vld [vmem:[%s1 + $0x4] sm:$0xf]
    %v136 = vunpack.c.l.bf16 %v134
    %v137 = vunpack.c.l.bf16 %v135
    %vm138 = vcmp.eq.f32.partialorder %v136, 0.0
    %vm139 = vcmp.eq.f32.partialorder %v137, 0.0
    %v140 = vsel %vm138, -10000.0, %v132
    %v141 = vsel %vm139, -10000.0, %v133
    %vm142 = vcmask 7168
    %v143 = vsel %vm142, %v140, -inf
    %v144 = vsel %vm142, %v141, -inf
    %v145 = vmax.f32 %v143, %v144
    %146 = vmax.xlane.f32.xlu0 %v145
    %v147 = vpop.xlane.xlu0 %146
    %v148 = vrot.slane %v147, 4
    %v149 = vmax.f32 %v147, %v148
    %v150 = vrot.slane %v149, 2
    %v151 = vmax.f32 %v149, %v150
    %v152 = vrot.slane %v151, 1
    %v153 = vmax.f32 %v151, %v152
    %s154 = vtos %v153
    %v155 = vstv %s154
    %v156 = vsub.f32 %v140, %v155
    %v157 = vsub.f32 %v141, %v155
    %v158 = vmul.f32 %v156, 1.442695
    %v159 = vpow.pop %v158
    %v160 = vmul.f32 %v157, 1.442695
    %v161 = vpow.pop %v160
    %v162 = vmul.f32 %v159, %v136
    %v163 = vmul.f32 %v161, %v137
    %v164 = vunpack.c.l.bf16 %v25
    %v165 = vunpack.c.l.bf16 %v26
    %167 = vset.pattern.permute.xlu0 0
    %168 = vperm.xlu0 %167, %v162
    %v169 = vpop.permute.xlu0 %168
    %172 = vset.pattern.permute.xlu0 0
    %173 = vperm.xlu0 %172, %v163
    %v174 = vpop.permute.xlu0 %173
    %v176 = vmul.f32 %v169, %v164
    %v177 = vmul.f32 %v174, %v165
    %v178 = vlaneseq
    %v179 = vand.u32 %v178, 127
    %v180 = vlaneseq
    %v181 = vshrl.u32 %v180, 7
    %v182 = vmul.u32 %v181, 8
    %vm183 = vcmp.ge.s32.totalorder %v179, %v182
    %v184 = vadd.s32 %v182, 8
    %vm185 = vcmp.lt.s32.totalorder %v179, %v184
    %vm186 = vmand %vm183, %vm185
    %v187 = vsel %vm186, 1, 0
    %v188 = vcvt.s32.f32 %v187
    %vm189 = vcmask 130048
    %v191 = vsel %vm189, %v188, 0
    %193 = vmatpush.msra.mxu0 0.0
    %194 = vmatpush.msra.mxu0 0.0
    %195 = vmatpush.msra.mxu0 0.0
    %196 = vmatpush.msra.mxu0 0.0
    %197 = vmatpush.msra.mxu0 0.0
    %198 = vmatpush.msra.mxu0 0.0
    %199 = vmatpush.msra.mxu0 0.0
    %200 = vmatpush.msra.mxu0 0.0
    %201 = vmatpush.msra.mxu0 0.0
    %202 = vmatpush.msra.mxu0 0.0
    %203 = vmatpush.msra.mxu0 0.0
    %204 = vmatpush.msra.mxu0 0.0
    %205 = vmatpush.msra.mxu0 0.0
    %206 = vmatpush.msra.mxu0 0.0
    %207 = vmatpush.msra.mxu0 %v177
    %208 = vmatpush.msra.mxu0 %v176
    %209 = vmatmul.f32.gmra.mxu0 %v191
    %v210 = vpop.f32.mrf.mxu0
    %v211 = vadd.f32 0.0, %v210
    %212 = vdwg.mxu0
    %213 = vmatpush.msra.mxu0 0.0
    %214 = vmatpush.msra.mxu0 0.0
    %215 = vmatpush.msra.mxu0 0.0
    %216 = vmatpush.msra.mxu0 0.0
    %217 = vmatpush.msra.mxu0 0.0
    %218 = vmatpush.msra.mxu0 0.0
    %219 = vmatpush.msra.mxu0 0.0
    %220 = vmatpush.msra.mxu0 0.0
    %221 = vmatpush.msra.mxu0 0.0
    %222 = vmatpush.msra.mxu0 0.0
    %223 = vmatpush.msra.mxu0 0.0
    %224 = vmatpush.msra.mxu0 0.0
    %225 = vmatpush.msra.mxu0 0.0
    %226 = vmatpush.msra.mxu0 0.0
    %227 = vmatpush.msra.mxu0 %v161
    %228 = vmatpush.msra.mxu0 %v159
    %229 = vmatmul.f32.gmra.mxu0 %v191
    %v230 = vpop.f32.mrf.mxu0
    %v231 = vadd.f32 0.0, %v230
    %232 = vdwg.mxu0
    %v233 = vmax.f32 %v231, 1e-30
    %v234 = vrcp.pop %v233
    %236 = vset.pattern.permute.xlu0 0
    %237 = vperm.xlu0 %236, %v234
    %v238 = vpop.permute.xlu0 %237
    %v240 = vmul.f32 %v211, %v238
    %241 = vst [vmem:[#allocation3] sm:$0x3] %v240
    // Predicated region
    $region26: #{tpu_custom_call.1} parent=1 // pred_check
      _
    $region27: #{tpu_custom_call.1} parent=1 // pred_check_branch
      %243 = sbr.rel (0) target = $region29
    $region28: #{tpu_custom_call.1} parent=1 // pred_region
      %245 = vsyncadd [#allocation4], 0
      %s247 = sshll.u32 [#allocation3], 4
      %s248 = int_to_ptr.vmem [resolvable:$true] %s247
      %s249 = sshll.u32 %s6, 4
      %s250 = int_to_ptr.hbm [resolvable:$true] %s249
      %252 = dma.vmem_to_hbm [thread:$0]  %s248, 32, %s250, [#allocation4]
    $region29: #{tpu_custom_call.1} parent=1 // pred_fallthru
      _
    // Predicated region
    $region30: #{tpu_custom_call.1} parent=1 // pred_check
      _
    $region31: #{tpu_custom_call.1} parent=1 // pred_check_branch
      %254 = sbr.rel (0) target = $region33
    $region32: #{tpu_custom_call.1} parent=1 // pred_region
      %256 = dma.done [#allocation4], 32
    $region33: #{tpu_custom_call.1} parent=1 // pred_fallthru
      _
    %257 = vsyncpa [#allocation4], 1

</llo_original>
